<compile_context>
chip_gen: v5e
topology: v5e:2x2
jax: 0.10.0
libtpu: 0.0.40
codegen_flags: <defaults>
</compile_context>

<pallas_src>
import functools

import jax
import jax.numpy as jnp
from jax.experimental import pallas as pl
from jax.experimental.pallas import tpu as pltpu


def _round_up(x, m):
    return (x + m - 1) // m * m


def _pad_rows(x, rows):
    r = x.shape[0]
    if r == rows:
        return x
    pad = [(0, rows - r)] + [(0, 0)] * (x.ndim - 1)
    return jnp.pad(x, pad)


# ----------------------------------------------------------------------------
# 1) Feature encoder:  [l2norm(v) | l2norm(t)] @ W1 + b1 -> leaky_relu -> @ W2 + b2
#    Row-tiled grid; weights resident (constant index maps); bf16 MXU inputs
#    with f32 accumulation; normalization/concat/cast fused in-kernel.
# ----------------------------------------------------------------------------
def _encoder_kernel(v_ref, t_ref, w1v_ref, w1t_ref, b1_ref, w2_ref, b2_ref,
                    out_ref):
    v = v_ref[...]                                        # (tm, dim_v) f32
    t = t_ref[...]                                        # (tm, dim_t) f32
    # F.normalize(x, dim=1) per modality (eps handled via the max clamp).
    v = v * jax.lax.rsqrt(jnp.maximum(jnp.sum(v * v, axis=-1, keepdims=True), 1e-24))
    t = t * jax.lax.rsqrt(jnp.maximum(jnp.sum(t * t, axis=-1, keepdims=True), 1e-24))
    # cat([v, t], 1) @ W1 == v @ W1[:dim_v] + t @ W1[dim_v:]  (no in-kernel concat)
    h = jnp.dot(v.astype(jnp.bfloat16), w1v_ref[...],
                preferred_element_type=jnp.float32)
    h = h + jnp.dot(t.astype(jnp.bfloat16), w1t_ref[...],
                    preferred_element_type=jnp.float32)
    h = h + b1_ref[...]
    h = jnp.where(h >= 0.0, h, 0.01 * h)                  # F.leaky_relu default slope
    out = jnp.dot(h.astype(jnp.bfloat16), w2_ref[...],
                  preferred_element_type=jnp.float32) + b2_ref[...]
    out_ref[...] = out.astype(out_ref.dtype)


def feature_extractor(v_feat, t_feat, w1v, w1t, b1, w2, b2,
                      *, tm_target=4096, vmem_budget=24 * 1024 * 1024):
    n, dim_v = v_feat.shape
    _, dim_t = t_feat.shape
    hid = w1v.shape[1]
    dim_e = w2.shape[1]

    # Row tile sized against a VMEM budget (double-buffered row blocks + resident
    # weights + hidden temp), capped at tm_target.  For small inputs use >= 2 grid
    # steps so the "parallel" row axis can shard across both v7x TensorCores.
    weight_bytes = 2 * 2 * ((dim_v + dim_t) * hid + hid * dim_e) + 4 * (hid + dim_e)
    bytes_per_row = 2 * 4 * (dim_v + dim_t + dim_e) + 4 * hid
    tm = max(8, min(tm_target, (vmem_budget - weight_bytes) // max(bytes_per_row, 1)))
    tm = max(8, (tm // 8) * 8)
    n8 = _round_up(n, 8)
    if n8 <= tm:
        tm = 8 if n8 <= 8 else _round_up((n8 + 1) // 2, 8)
    n_pad = _round_up(n8, tm)

    v_p = _pad_rows(v_feat.astype(jnp.float32), n_pad)
    t_p = _pad_rows(t_feat.astype(jnp.float32), n_pad)

    out = pl.pallas_call(
        _encoder_kernel,
        out_shape=jax.ShapeDtypeStruct((n_pad, dim_e), jnp.float32),
        grid_spec=pltpu.PrefetchScalarGridSpec(
            num_scalar_prefetch=0,
            grid=(n_pad // tm,),
            in_specs=[
                pl.BlockSpec((tm, dim_v), lambda i: (i, 0)),
                pl.BlockSpec((tm, dim_t), lambda i: (i, 0)),
                pl.BlockSpec((dim_v, hid), lambda i: (0, 0)),
                pl.BlockSpec((dim_t, hid), lambda i: (0, 0)),
                pl.BlockSpec((1, hid), lambda i: (0, 0)),
                pl.BlockSpec((hid, dim_e), lambda i: (0, 0)),
                pl.BlockSpec((1, dim_e), lambda i: (0, 0)),
            ],
            out_specs=pl.BlockSpec((tm, dim_e), lambda i: (i, 0)),
        ),
        compiler_params=pltpu.CompilerParams(
            dimension_semantics=("parallel",),
            vmem_limit_bytes=32 * 1024 * 1024),
    )(v_p, t_p, w1v, w1t, b1, w2, b2)
    # Padded rows (index >= n) hold bias-only garbage; every downstream gather
    # clips its indices to [0, n), so they are never read — no output slice.
    return out


# ----------------------------------------------------------------------------
# 2) Fused adv contrastive (normalized) + pred contrastive (raw) + reg-norm.
#    Inputs reshaped to (B, G, dim_E); grid-tiled over samples; scalar
#    accumulation directly in the revisited (1,1) output blocks.
# ----------------------------------------------------------------------------
def _contrastive_reg_kernel(u_ref, p_ref, a_ref, ai_ref,
                            adv_ref, pred_ref, reg_ref,
                            *, inv_temp, num_samples, num_rows):
    i = pl.program_id(0)

    @pl.when(i == 0)
    def _init():
        adv_ref[...] = jnp.zeros_like(adv_ref)
        pred_ref[...] = jnp.zeros_like(pred_ref)
        reg_ref[...] = jnp.zeros_like(reg_ref)

    u = u_ref[...]                          # (tb, G, D) f32
    p = p_ref[...]
    a = a_ref[...]
    ai = ai_ref[...]

    # One last-axis reduction per quantity — no per-group mask loop.
    u_ss = jnp.sum(u * u, axis=-1)          # (tb, G)
    p_ss = jnp.sum(p * p, axis=-1)
    a_ss = jnp.sum(a * a, axis=-1)
    dot_up = jnp.sum(u * p, axis=-1)
    dot_ui = jnp.sum(u * ai, axis=-1)

    # F.normalize(u).F.normalize(p) == (u.p) * rsqrt(|u|^2) * rsqrt(|p|^2)
    inv_u = jax.lax.rsqrt(jnp.maximum(u_ss, 1e-24))
    inv_p = jax.lax.rsqrt(jnp.maximum(p_ss, 1e-24))
    adv_sim = dot_up * inv_u * inv_p * inv_temp      # (tb, G)
    pred_sim = dot_ui * inv_temp

    tb = u.shape[0]
    samp = jax.lax.broadcasted_iota(jnp.int32, (tb, 1), 0) + i * tb
    valid = (samp < num_samples).astype(jnp.float32)  # mask padded samples

    def lse_partial(sims):
        # -log(exp(pos)/sum(exp(sims))) in stable log-sum-exp form.
        m = jnp.max(sims, axis=-1, keepdims=True)
        denom = jnp.sum(jnp.exp(sims - m), axis=-1, keepdims=True)
        return jnp.sum((m + jnp.log(denom) - sims[:, 0:1]) * valid)

    adv_ref[...] += lse_partial(adv_sim)
    pred_ref[...] += lse_partial(pred_sim)
    # Padded rows are all-zero -> sqrt(0) adds nothing; no mask needed here.
    reg_ref[...] += jnp.sum(jnp.sqrt(u_ss)) + jnp.sum(jnp.sqrt(a_ss))

    @pl.when(i == pl.num_programs(0) - 1)
    def _finalize():
        adv_ref[...] *= 1.0 / num_samples
        pred_ref[...] *= 1.0 / num_samples
        reg_ref[...] *= 1.0 / (2.0 * num_rows)


def fused_contrastive_reg(user_emb, pos_emb, all_item_emb, all_item_input,
                          group, temp, *, tb_target=256):
    rows, d = user_emb.shape
    b = rows // group

    # Sample tile sized from the (8,128)-tiled VMEM footprint of the 4 arrays,
    # double-buffered, targeting ~16 MiB (fits v7x's smaller VMEM).
    padded_sample_bytes = 4 * 2 * 4 * _round_up(group, 8) * _round_up(d, 128)
    tb = max(1, min(tb_target, (16 * 1024 * 1024) // padded_sample_bytes, b))
    b_pad = _round_up(b, tb)

    def prep(x):
        return _pad_rows(x.reshape(b, group, d).astype(jnp.float32), b_pad)

    kernel = functools.partial(_contrastive_reg_kernel,
                               inv_temp=float(1.0 / temp),
                               num_samples=b, num_rows=rows)

    tile_spec = pl.BlockSpec((tb, group, d), lambda i: (i, 0, 0))
    scalar_spec = pl.BlockSpec((1, 1), lambda i: (0, 0))

    adv, pred, reg = pl.pallas_call(
        kernel,
        out_shape=tuple(jax.ShapeDtypeStruct((1, 1), jnp.float32)
                        for _ in range(3)),
        grid_spec=pltpu.PrefetchScalarGridSpec(
            num_scalar_prefetch=0,
            grid=(b_pad // tb,),
            in_specs=[tile_spec, tile_spec, tile_spec, tile_spec],
            out_specs=(scalar_spec, scalar_spec, scalar_spec),
        ),
        compiler_params=pltpu.CompilerParams(
            dimension_semantics=("arbitrary",),
            vmem_limit_bytes=32 * 1024 * 1024),
    )(prep(user_emb), prep(pos_emb), prep(all_item_emb), prep(all_item_input))
    return adv[0, 0], pred[0, 0], reg[0, 0]


# ----------------------------------------------------------------------------
# 3) Similarity MSE between cold id-embeddings and generated embeddings.
#    Row-tiled sum-of-squares; denominator uses the TRUE element count so the
#    row padding cannot change the mean.
# ----------------------------------------------------------------------------
def _mse_kernel(ct_ref, cg_ref, out_ref, *, inv_denom):
    i = pl.program_id(0)

    @pl.when(i == 0)
    def _init():
        out_ref[...] = jnp.zeros_like(out_ref)

    diff = ct_ref[...] - cg_ref[...]
    out_ref[...] += jnp.sum(diff * diff)

    @pl.when(i == pl.num_programs(0) - 1)
    def _finalize():
        out_ref[...] *= inv_denom


def mse_loss(ct, cg, *, tr_target=1024):
    n, d = ct.shape
    n8 = _round_up(n, 8)
    tr = min(_round_up(tr_target, 8), n8)
    n_pad = _round_up(n8, tr)
    ct_p = _pad_rows(ct.astype(jnp.float32), n_pad)
    cg_p = _pad_rows(cg.astype(jnp.float32), n_pad)
    out = pl.pallas_call(
        functools.partial(_mse_kernel, inv_denom=float(1.0 / (n * d))),
        out_shape=jax.ShapeDtypeStruct((1, 1), jnp.float32),
        grid_spec=pltpu.PrefetchScalarGridSpec(
            num_scalar_prefetch=0,
            grid=(n_pad // tr,),
            in_specs=[pl.BlockSpec((tr, d), lambda i: (i, 0)),
                      pl.BlockSpec((tr, d), lambda i: (i, 0))],
            out_specs=pl.BlockSpec((1, 1), lambda i: (0, 0)),
        ),
        compiler_params=pltpu.CompilerParams(
            dimension_semantics=("arbitrary",),
            vmem_limit_bytes=32 * 1024 * 1024),
    )(ct_p, cg_p)
    return out[0, 0]


# ----------------------------------------------------------------------------
# One-time (per-parameter-update) prep hoisted out of the forward step:
# split/cast encoder weights, cold-item index tables, is_cold mask.
# ----------------------------------------------------------------------------
def prepare_static(params, cold_item, num_user, num_item):
    dim_v = params["v_feat"].shape[1]
    cold_ids = jnp.asarray(cold_item, dtype=jnp.int32)
    w1 = params["w1"]
    return {
        "w1v": w1[:dim_v].astype(jnp.bfloat16),
        "w1t": w1[dim_v:].astype(jnp.bfloat16),
        "b1": params["b1"].reshape(1, -1).astype(jnp.float32),
        "w2": params["w2"].astype(jnp.bfloat16),
        "b2": params["b2"].reshape(1, -1).astype(jnp.float32),
        "cold_ids": cold_ids,
        "feat_id": cold_ids - num_user,
        "is_cold": jnp.zeros((num_user + num_item,), jnp.bool_)
                     .at[cold_ids].set(True),
    }


# ----------------------------------------------------------------------------
# GAR forward (glue in plain JAX, hot paths in the Pallas kernels above)
# ----------------------------------------------------------------------------
def gar_forward(params, static, user_tensor, item_tensor, *, num_user, num_item,
                num_neg, temp_value, num_sample, rand_key):
    G = 1 + num_neg
    feature_emb = feature_extractor(
        params["v_feat"], params["t_feat"],
        static["w1v"], static["w1t"], static["b1"], static["w2"], static["b2"])

    id_embedding = params["id_embedding"]
    is_cold = static["is_cold"]

    # get_item_embedding() without the O(table x dim_E) clone+scatter:
    # item row = generated feature row if the item is cold, else the id row.
    def item_lookup(idx):
        base = id_embedding[idx]
        gen = feature_emb[jnp.clip(idx - num_user, 0, num_item - 1)]
        return jnp.where(is_cold[idx][:, None], gen, base)

    pos_item = jnp.repeat(item_tensor[:, 0:1], G, axis=1).reshape(-1)
    users = user_tensor.reshape(-1)
    items = item_tensor.reshape(-1)

    user_embedding = id_embedding[users]
    pos_item_embedding = item_lookup(pos_item)
    all_item_embedding = item_lookup(items)

    # Random replacement of a subset of item rows by generated features.
    n = all_item_embedding.shape[0]
    num_rand = int(n * num_sample)
    all_item_input = all_item_embedding
    if num_rand > 0:
        rand_index = jax.random.randint(rand_key, (num_rand,), 0, n)
        # Matches PyTorch: feature_emb[rand_index % feature_emb.size(0)]
        all_item_input = all_item_input.at[rand_index].set(
            feature_emb[rand_index % num_item])

    adv_loss, pred_loss, reg_loss = fused_contrastive_reg(
        user_embedding, pos_item_embedding, all_item_embedding, all_item_input,
        G, temp_value)
    sim_loss = mse_loss(id_embedding[static["cold_ids"]],
                        feature_emb[static["feat_id"]])
    return adv_loss, pred_loss, reg_loss, sim_loss


if __name__ == "__main__":
    key = jax.random.PRNGKey(0)
    keys = jax.random.split(key, 10)

    # small shapes consistent with the module
    num_user, num_item, dim_E = 8, 8, 32
    dim_v, dim_t = 16, 16            # a_feat is None
    num_neg = 2
    temp_value = 2.0
    num_sample = 0.5
    B = 4
    warm_item = list(range(num_user, num_user + num_item // 2))   # unused in forward
    cold_item = list(range(num_user + num_item // 2, num_user + num_item))
    dim_feat = dim_v + dim_t

    # deterministic parameter init (xavier-ish / kaiming-ish scales; synthetic)
    xav = (2.0 / (num_user + num_item + dim_E)) ** 0.5
    params = {
        "id_embedding": xav * jax.random.normal(
            keys[0], (num_user + num_item, dim_E), jnp.float32),
        "w1": jax.random.normal(keys[1], (dim_feat, 256), jnp.float32)
              * (1.0 / dim_feat ** 0.5),
        "b1": 0.01 * jax.random.normal(keys[2], (256,), jnp.float32),
        "w2": jax.random.normal(keys[3], (256, dim_E), jnp.float32)
              * (1.0 / 256 ** 0.5),
        "b2": 0.01 * jax.random.normal(keys[4], (dim_E,), jnp.float32),
        "v_feat": jax.random.normal(keys[5], (num_item, dim_v), jnp.float32),
        "t_feat": jax.random.normal(keys[6], (num_item, dim_t), jnp.float32),
    }
    # TODO(synk): self.result buffer (kaiming_normal) and self.mlp only matter
    # for eval_mode_embedding() / are unused in forward(), so they are omitted.

    static = prepare_static(params, cold_item, num_user, num_item)

    user_tensor = jax.random.randint(keys[7], (B, 1 + num_neg), 0, num_user)
    item_tensor = jax.random.randint(keys[8], (B, 1 + num_neg),
                                     num_user, num_user + num_item)

    losses = gar_forward(params, static, user_tensor, item_tensor,
                         num_user=num_user, num_item=num_item,
                         num_neg=num_neg, temp_value=temp_value,
                         num_sample=num_sample, rand_key=keys[9])
    jax.block_until_ready(losses)
    print("KERNEL_OK")
</pallas_src>

<mosaic_0001>
module attributes {stable_mosaic.version = 11 : i64} {
  func.func @_encoder_kernel(%arg0: i32, %arg1: memref<8x16xf32, #tpu.memory_space<vmem>>, %arg2: memref<8x16xf32, #tpu.memory_space<vmem>>, %arg3: memref<16x256xbf16, #tpu.memory_space<vmem>>, %arg4: memref<16x256xbf16, #tpu.memory_space<vmem>>, %arg5: memref<1x256xf32, #tpu.memory_space<vmem>>, %arg6: memref<256x32xbf16, #tpu.memory_space<vmem>>, %arg7: memref<1x32xf32, #tpu.memory_space<vmem>>, %arg8: memref<8x32xf32, #tpu.memory_space<vmem>>) attributes {dimension_semantics = [#tpu.dimension_semantics<parallel>], iteration_bounds = array<i64: 1>, scalar_prefetch = 0 : i64, scratch_operands = 0 : i64, tpu.core_type = #tpu.core_type<tc>, window_params = [{transform_indices = @transform_0, window_bounds = array<i64: 8, 16>}, {transform_indices = @transform_1, window_bounds = array<i64: 8, 16>}, {pipeline_mode = #tpu.pipeline_mode<synchronous>, transform_indices = @transform_2, window_bounds = array<i64: 16, 256>}, {pipeline_mode = #tpu.pipeline_mode<synchronous>, transform_indices = @transform_3, window_bounds = array<i64: 16, 256>}, {pipeline_mode = #tpu.pipeline_mode<synchronous>, transform_indices = @transform_4, window_bounds = array<i64: 1, 256>}, {pipeline_mode = #tpu.pipeline_mode<synchronous>, transform_indices = @transform_5, window_bounds = array<i64: 256, 32>}, {pipeline_mode = #tpu.pipeline_mode<synchronous>, transform_indices = @transform_6, window_bounds = array<i64: 1, 32>}, {transform_indices = @transform_7, window_bounds = array<i64: 8, 32>}]} {
    %c0 = arith.constant 0 : index
    %c0_0 = arith.constant 0 : index
    %0 = vector.load %arg1[%c0, %c0_0] : memref<8x16xf32, #tpu.memory_space<vmem>>, vector<8x16xf32>
    %c0_1 = arith.constant 0 : index
    %c0_2 = arith.constant 0 : index
    %1 = vector.load %arg2[%c0_1, %c0_2] : memref<8x16xf32, #tpu.memory_space<vmem>>, vector<8x16xf32>
    %2 = arith.mulf %0, %0 : vector<8x16xf32>
    %cst = arith.constant dense<0.000000e+00> : vector<8xf32>
    %3 = vector.multi_reduction <add>, %2, %cst [1] : vector<8x16xf32> to vector<8xf32>
    %4 = vector.shape_cast %3 : vector<8xf32> to vector<8x1xf32>
    %cst_3 = arith.constant 1.000000e-24 : f32
    %5 = vector.broadcast %cst_3 : f32 to vector<8x1xf32>
    %6 = arith.maximumf %4, %5 : vector<8x1xf32>
    %7 = math.rsqrt %6 : vector<8x1xf32>
    %8 = vector.broadcast %7 : vector<8x1xf32> to vector<8x16xf32>
    %9 = arith.mulf %0, %8 : vector<8x16xf32>
    %10 = arith.mulf %1, %1 : vector<8x16xf32>
    %cst_4 = arith.constant dense<0.000000e+00> : vector<8xf32>
    %11 = vector.multi_reduction <add>, %10, %cst_4 [1] : vector<8x16xf32> to vector<8xf32>
    %12 = vector.shape_cast %11 : vector<8xf32> to vector<8x1xf32>
    %cst_5 = arith.constant 1.000000e-24 : f32
    %13 = vector.broadcast %cst_5 : f32 to vector<8x1xf32>
    %14 = arith.maximumf %12, %13 : vector<8x1xf32>
    %15 = math.rsqrt %14 : vector<8x1xf32>
    %16 = vector.broadcast %15 : vector<8x1xf32> to vector<8x16xf32>
    %17 = arith.mulf %1, %16 : vector<8x16xf32>
    %18 = arith.truncf %9 : vector<8x16xf32> to vector<8x16xbf16>
    %c0_6 = arith.constant 0 : index
    %c0_7 = arith.constant 0 : index
    %19 = vector.load %arg3[%c0_6, %c0_7] : memref<16x256xbf16, #tpu.memory_space<vmem>>, vector<16x256xbf16>
    %cst_8 = arith.constant dense<0.000000e+00> : vector<8x256xf32>
    %20 = tpu.matmul %18, %19, %cst_8 {dimension_numbers = #tpu.dot_dimension_numbers<[1], [0], [0], [1], [0, 0, 1, 1], [], []>} : vector<8x16xbf16>, vector<16x256xbf16>, vector<8x256xf32> -> vector<8x256xf32>
    %21 = arith.truncf %17 : vector<8x16xf32> to vector<8x16xbf16>
    %c0_9 = arith.constant 0 : index
    %c0_10 = arith.constant 0 : index
    %22 = vector.load %arg4[%c0_9, %c0_10] : memref<16x256xbf16, #tpu.memory_space<vmem>>, vector<16x256xbf16>
    %cst_11 = arith.constant dense<0.000000e+00> : vector<8x256xf32>
    %23 = tpu.matmul %21, %22, %cst_11 {dimension_numbers = #tpu.dot_dimension_numbers<[1], [0], [0], [1], [0, 0, 1, 1], [], []>} : vector<8x16xbf16>, vector<16x256xbf16>, vector<8x256xf32> -> vector<8x256xf32>
    %24 = arith.addf %20, %23 : vector<8x256xf32>
    %c0_12 = arith.constant 0 : index
    %c0_13 = arith.constant 0 : index
    %25 = vector.load %arg5[%c0_12, %c0_13] : memref<1x256xf32, #tpu.memory_space<vmem>>, vector<1x256xf32>
    %26 = vector.broadcast %25 : vector<1x256xf32> to vector<8x256xf32>
    %27 = arith.addf %24, %26 : vector<8x256xf32>
    %cst_14 = arith.constant 0.000000e+00 : f32
    %28 = vector.broadcast %cst_14 : f32 to vector<8x256xf32>
    %29 = arith.cmpf oge, %27, %28 : vector<8x256xf32>
    %cst_15 = arith.constant 0.00999999977 : f32
    %30 = vector.broadcast %cst_15 : f32 to vector<8x256xf32>
    %31 = arith.mulf %30, %27 : vector<8x256xf32>
    %32 = arith.select %29, %27, %31 : vector<8x256xi1>, vector<8x256xf32>
    %33 = arith.truncf %32 : vector<8x256xf32> to vector<8x256xbf16>
    %c0_16 = arith.constant 0 : index
    %c0_17 = arith.constant 0 : index
    %34 = vector.load %arg6[%c0_16, %c0_17] : memref<256x32xbf16, #tpu.memory_space<vmem>>, vector<256x32xbf16>
    %cst_18 = arith.constant dense<0.000000e+00> : vector<8x32xf32>
    %35 = tpu.matmul %33, %34, %cst_18 {dimension_numbers = #tpu.dot_dimension_numbers<[1], [0], [0], [1], [0, 0, 1, 1], [], []>} : vector<8x256xbf16>, vector<256x32xbf16>, vector<8x32xf32> -> vector<8x32xf32>
    %c0_19 = arith.constant 0 : index
    %c0_20 = arith.constant 0 : index
    %36 = vector.load %arg7[%c0_19, %c0_20] : memref<1x32xf32, #tpu.memory_space<vmem>>, vector<1x32xf32>
    %37 = vector.broadcast %36 : vector<1x32xf32> to vector<8x32xf32>
    %38 = arith.addf %35, %37 : vector<8x32xf32>
    %c0_21 = arith.constant 0 : index
    %c0_22 = arith.constant 0 : index
    %39 = vector.load %arg8[%c0_21, %c0_22] : memref<8x32xf32, #tpu.memory_space<vmem>>, vector<8x32xf32>
    tpu.vector_store %arg8[%c0_21, %c0_22], %38 {strides = array<i32>} : memref<8x32xf32, #tpu.memory_space<vmem>>, vector<8x32xf32>,
    return
  }
  func.func @transform_0(%arg0: i32) -> (i32, i32) {
    %c0_i32 = arith.constant 0 : i32
    %c0_i32_0 = arith.constant 0 : i32
    return %arg0, %c0_i32 : i32, i32
  }
  func.func @transform_1(%arg0: i32) -> (i32, i32) {
    %c0_i32 = arith.constant 0 : i32
    %c0_i32_0 = arith.constant 0 : i32
    return %arg0, %c0_i32 : i32, i32
  }
  func.func @transform_2(%arg0: i32) -> (i32, i32) {
    %c0_i32 = arith.constant 0 : i32
    %c0_i32_0 = arith.constant 0 : i32
    %c0_i32_1 = arith.constant 0 : i32
    return %c0_i32, %c0_i32_0 : i32, i32
  }
  func.func @transform_3(%arg0: i32) -> (i32, i32) {
    %c0_i32 = arith.constant 0 : i32
    %c0_i32_0 = arith.constant 0 : i32
    %c0_i32_1 = arith.constant 0 : i32
    return %c0_i32, %c0_i32_0 : i32, i32
  }
  func.func @transform_4(%arg0: i32) -> (i32, i32) {
    %c0_i32 = arith.constant 0 : i32
    %c0_i32_0 = arith.constant 0 : i32
    %c0_i32_1 = arith.constant 0 : i32
    return %c0_i32, %c0_i32_0 : i32, i32
  }
  func.func @transform_5(%arg0: i32) -> (i32, i32) {
    %c0_i32 = arith.constant 0 : i32
    %c0_i32_0 = arith.constant 0 : i32
    %c0_i32_1 = arith.constant 0 : i32
    return %c0_i32, %c0_i32_0 : i32, i32
  }
  func.func @transform_6(%arg0: i32) -> (i32, i32) {
    %c0_i32 = arith.constant 0 : i32
    %c0_i32_0 = arith.constant 0 : i32
    %c0_i32_1 = arith.constant 0 : i32
    return %c0_i32, %c0_i32_0 : i32, i32
  }
  func.func @transform_7(%arg0: i32) -> (i32, i32) {
    %c0_i32 = arith.constant 0 : i32
    %c0_i32_0 = arith.constant 0 : i32
    return %arg0, %c0_i32 : i32, i32
  }
}

</mosaic_0001>

<llo_original>
// kernel: tpu_custom_call.1
$region0: #{tpu_custom_call.1}
  #allocation0 [shape = 'u32[]', space=smem, size = 0x4, offset = 0x4, fixed_abs, tag = 'smem constant byte address 0x4 - core index']
  #allocation1 [shape = 'u32[72,128]{1,0:T(1,128)}', space=vmem, size = 0x9000, scoped, tag = 'internal scratch']
  %s0 = inlined_call_operand.vmem [shape: f32[8,16], index: 0, kind: input, shape index: {}]
  %s1 = inlined_call_operand.vmem [shape: f32[8,16], index: 1, kind: input, shape index: {}]
  %s2 = inlined_call_operand.vmem [shape: bf16[16,256], index: 2, kind: input, shape index: {}]
  %s3 = inlined_call_operand.vmem [shape: bf16[16,256], index: 3, kind: input, shape index: {}]
  %s4 = inlined_call_operand.vmem [shape: f32[1,256], index: 4, kind: input, shape index: {}]
  %s5 = inlined_call_operand.vmem [shape: bf16[256,32], index: 5, kind: input, shape index: {}]
  %s6 = inlined_call_operand.vmem [shape: f32[1,32], index: 6, kind: input, shape index: {}]
  %s7 = inlined_call_operand.hbm [shape: f32[8,32], index: 7, kind: output, shape index: {}]
  %s8 = sld [smem:[#allocation0]]
  $region38: #{tpu_custom_call.1} parent=0
    _
  %s10 = ssub.s32 1, %s8
  %s11 = scalar_select 0, %s10, %s8
  $region1: #{tpu_custom_call.1} parent=0
    #allocation2 [shape = 'u8[4096]{0}', space=vmem, size = 0x1000, scoped, tag = 'output window, operand 0, single buffered']
    #allocation3 [shape = 's32[1]{0}', space=sflag, size = 0x4, scoped, tag = 'scoped memory for tpu_custom_call.1']
    %12 = vsyncpa [#allocation3], 0
    // Predicated region
    $region2: #{tpu_custom_call.1} parent=1 // pred_check
      _
    $region3: #{tpu_custom_call.1} parent=1 // pred_check_branch
      %14 = sbr.rel (0) target = $region5
    $region4: #{tpu_custom_call.1} parent=1 // pred_region
      _
    $region5: #{tpu_custom_call.1} parent=1 // pred_fallthru
      _
    // Predicated region
    $region6: #{tpu_custom_call.1} parent=1 // pred_check
      _
    $region7: #{tpu_custom_call.1} parent=1 // pred_check_branch
      %16 = sbr.rel (0) target = $region9
    $region8: #{tpu_custom_call.1} parent=1 // pred_region
      _
    $region9: #{tpu_custom_call.1} parent=1 // pred_fallthru
      _
    // Predicated region
    $region10: #{tpu_custom_call.1} parent=1 // pred_check
      _
    $region11: #{tpu_custom_call.1} parent=1 // pred_check_branch
      %18 = sbr.rel (0) target = $region13
    $region12: #{tpu_custom_call.1} parent=1 // pred_region
      _
    $region13: #{tpu_custom_call.1} parent=1 // pred_fallthru
      _
    // Predicated region
    $region14: #{tpu_custom_call.1} parent=1 // pred_check
      _
    $region15: #{tpu_custom_call.1} parent=1 // pred_check_branch
      %20 = sbr.rel (0) target = $region17
    $region16: #{tpu_custom_call.1} parent=1 // pred_region
      _
    $region17: #{tpu_custom_call.1} parent=1 // pred_fallthru
      _
    // Predicated region
    $region18: #{tpu_custom_call.1} parent=1 // pred_check
      _
    $region19: #{tpu_custom_call.1} parent=1 // pred_check_branch
      %22 = sbr.rel (0) target = $region21
    $region20: #{tpu_custom_call.1} parent=1 // pred_region
      _
    $region21: #{tpu_custom_call.1} parent=1 // pred_fallthru
      _
    // Predicated region
    $region22: #{tpu_custom_call.1} parent=1 // pred_check
      _
    $region23: #{tpu_custom_call.1} parent=1 // pred_check_branch
      %24 = sbr.rel (0) target = $region25
    $region24: #{tpu_custom_call.1} parent=1 // pred_region
      _
    $region25: #{tpu_custom_call.1} parent=1 // pred_fallthru
      _
    // Predicated region
    $region26: #{tpu_custom_call.1} parent=1 // pred_check
      _
    $region27: #{tpu_custom_call.1} parent=1 // pred_check_branch
      %26 = sbr.rel (0) target = $region29
    $region28: #{tpu_custom_call.1} parent=1 // pred_region
      _
    $region29: #{tpu_custom_call.1} parent=1 // pred_fallthru
      _
    %v28 = vld [vmem:[%s0] sm:$0xff]
    %v29 = vld [vmem:[%s1] sm:$0xff]
    %v30 = vmul.f32 %v28, %v28
    %vm31 = vcmask 130048
    %v32 = vsel %vm31, %v30, 0.0
    %33 = vadd.xlane.f32.xlu0 %v32
    %v34 = vpop.xlane.xlu0 %33
    %v35 = vmax.f32 %v34, 1e-24
    %v36 = vrsqrt.pop %v35
    %v37 = vmul.f32 %v36, %v35
    %v38 = vmul.f32 %v37, %v36
    %v39 = vmul.f32 0.5, %v38
    %v40 = vsub.f32 1.5, %v39
    %v41 = vmul.f32 %v36, %v40
    %vm42 = vweird.f32 %v35
    %vm43 = vweird.f32 %v36
    %vm44 = vmor %vm42, %vm43
    %v45 = vsel %vm44, %v36, %v41
    %v46 = vmul.f32 %v28, %v45
    %v47 = vmul.f32 %v29, %v29
    %v48 = vsel %vm31, %v47, 0.0
    %49 = vadd.xlane.f32.xlu0 %v48
    %v50 = vpop.xlane.xlu0 %49
    %v51 = vmax.f32 %v50, 1e-24
    %v52 = vrsqrt.pop %v51
    %v53 = vmul.f32 %v52, %v51
    %v54 = vmul.f32 %v53, %v52
    %v55 = vmul.f32 0.5, %v54
    %v56 = vsub.f32 1.5, %v55
    %v57 = vmul.f32 %v52, %v56
    %vm58 = vweird.f32 %v51
    %vm59 = vweird.f32 %v52
    %vm60 = vmor %vm58, %vm59
    %v61 = vsel %vm60, %v52, %v57
    %v62 = vmul.f32 %v29, %v61
    %v63 = vpack.c.bf16 %v46, %v46
    %v64 = vld [vmem:[%s2] sm:$0xff]
    %v65 = vld [vmem:[%s2 + $0x8] sm:$0xff]
    %v66 = vpack.c.bf16 %v62, %v62
    %v67 = vld [vmem:[%s3] sm:$0xff]
    %v68 = vld [vmem:[%s3 + $0x8] sm:$0xff]
    %v71 = vunpack.c.l.b16 %v67
    %v72 = vunpack.c.h.b16 %v67
    %v73 = vunpack.c.l.b16 %v68
    %v74 = vunpack.c.h.b16 %v68
    %v75 = vpack.c.b16 %v73, %v71
    %v76 = vpack.c.b16 %v74, %v72
    %v80 = vsel %vm31, %v66, 0
    %82 = vmatpush.bf16.msra.mxu0 0
    %83 = vmatpush.bf16.msra.mxu0 0
    %84 = vmatpush.bf16.msra.mxu0 0
    %85 = vmatpush.bf16.msra.mxu0 0
    %86 = vmatpush.bf16.msra.mxu0 0
    %87 = vmatpush.bf16.msra.mxu0 0
    %88 = vmatpush.bf16.msra.mxu0 0
    %89 = vmatpush.bf16.msra.mxu0 %v75
    %90 = vmatmul.bf16.gmra.mxu0 %v80
    %v91 = vpop.f32.mrf.mxu0
    %v92 = vadd.f32 0.0, %v91
    %v93 = vpop.f32.mrf.mxu0
    %94 = vdwg.mxu0
    %95 = vmatpush.bf16.msra.mxu0 0
    %96 = vmatpush.bf16.msra.mxu0 0
    %97 = vmatpush.bf16.msra.mxu0 0
    %98 = vmatpush.bf16.msra.mxu0 0
    %99 = vmatpush.bf16.msra.mxu0 0
    %100 = vmatpush.bf16.msra.mxu0 0
    %101 = vmatpush.bf16.msra.mxu0 0
    %102 = vmatpush.bf16.msra.mxu0 %v76
    %103 = vmatmul.bf16.gmra.mxu0 %v80
    %v104 = vpop.f32.mrf.mxu0
    %v105 = vadd.f32 0.0, %v104
    %v106 = vpop.f32.mrf.mxu0
    %107 = vdwg.mxu0
    %v110 = vunpack.c.l.b16 %v64
    %v111 = vunpack.c.h.b16 %v64
    %v112 = vunpack.c.l.b16 %v65
    %v113 = vunpack.c.h.b16 %v65
    %v114 = vpack.c.b16 %v112, %v110
    %v115 = vpack.c.b16 %v113, %v111
    %v119 = vsel %vm31, %v63, 0
    %121 = vmatpush.bf16.msra.mxu0 0
    %122 = vmatpush.bf16.msra.mxu0 0
    %123 = vmatpush.bf16.msra.mxu0 0
    %124 = vmatpush.bf16.msra.mxu0 0
    %125 = vmatpush.bf16.msra.mxu0 0
    %126 = vmatpush.bf16.msra.mxu0 0
    %127 = vmatpush.bf16.msra.mxu0 0
    %128 = vmatpush.bf16.msra.mxu0 %v114
    %129 = vmatmul.bf16.gmra.mxu0 %v119
    %v130 = vpop.f32.mrf.mxu0
    %v131 = vadd.f32 %v92, %v130
    %v132 = vpop.f32.mrf.mxu0
    %133 = vdwg.mxu0
    %134 = vmatpush.bf16.msra.mxu0 0
    %135 = vmatpush.bf16.msra.mxu0 0
    %136 = vmatpush.bf16.msra.mxu0 0
    %137 = vmatpush.bf16.msra.mxu0 0
    %138 = vmatpush.bf16.msra.mxu0 0
    %139 = vmatpush.bf16.msra.mxu0 0
    %140 = vmatpush.bf16.msra.mxu0 0
    %141 = vmatpush.bf16.msra.mxu0 %v115
    %142 = vmatmul.bf16.gmra.mxu0 %v119
    %v143 = vpop.f32.mrf.mxu0
    %v144 = vadd.f32 %v105, %v143
    %v145 = vpop.f32.mrf.mxu0
    %146 = vdwg.mxu0
    %v147 = vld [vmem:[%s4] sm:$0x3]
    %v149 = vperm.slane %v147, 0
    %v150 = vperm.slane %v147, 1
    %v153 = vadd.f32 %v131, %v149
    %v154 = vadd.f32 %v144, %v150
    %vm155 = vcmp.ge.f32.partialorder %v153, 0.0
    %vm156 = vcmp.ge.f32.partialorder %v154, 0.0
    %v157 = vmul.f32 %v153, 0.01
    %v158 = vmul.f32 %v154, 0.01
    %v159 = vsel %vm155, %v153, %v157
    %v160 = vsel %vm156, %v154, %v158
    %v161 = vpack.c.bf16 %v159, %v159
    %v162 = vpack.c.bf16 %v160, %v160
    %v163 = vld [vmem:[%s5] sm:$0xf]
    %v164 = vld [vmem:[%s5 + $0x4] sm:$0xf]
    %v165 = vld [vmem:[%s5 + $0x8] sm:$0xf]
    %v166 = vld [vmem:[%s5 + $0xc] sm:$0xf]
    %v167 = vld [vmem:[%s5 + $0x10] sm:$0xf]
    %v168 = vld [vmem:[%s5 + $0x14] sm:$0xf]
    %v169 = vld [vmem:[%s5 + $0x18] sm:$0xf]
    %v170 = vld [vmem:[%s5 + $0x1c] sm:$0xf]
    %v171 = vld [vmem:[%s5 + $0x20] sm:$0xf]
    %v172 = vld [vmem:[%s5 + $0x24] sm:$0xf]
    %v173 = vld [vmem:[%s5 + $0x28] sm:$0xf]
    %v174 = vld [vmem:[%s5 + $0x2c] sm:$0xf]
    %v175 = vld [vmem:[%s5 + $0x30] sm:$0xf]
    %v176 = vld [vmem:[%s5 + $0x34] sm:$0xf]
    %v177 = vld [vmem:[%s5 + $0x38] sm:$0xf]
    %v178 = vld [vmem:[%s5 + $0x3c] sm:$0xf]
    %v179 = vld [vmem:[%s5 + $0x40] sm:$0xf]
    %v180 = vld [vmem:[%s5 + $0x44] sm:$0xf]
    %v181 = vld [vmem:[%s5 + $0x48] sm:$0xf]
    %v182 = vld [vmem:[%s5 + $0x4c] sm:$0xf]
    %v183 = vld [vmem:[%s5 + $0x50] sm:$0xf]
    %v184 = vld [vmem:[%s5 + $0x54] sm:$0xf]
    %v185 = vld [vmem:[%s5 + $0x58] sm:$0xf]
    %v186 = vld [vmem:[%s5 + $0x5c] sm:$0xf]
    %v187 = vld [vmem:[%s5 + $0x60] sm:$0xf]
    %v188 = vld [vmem:[%s5 + $0x64] sm:$0xf]
    %v189 = vld [vmem:[%s5 + $0x68] sm:$0xf]
    %v190 = vld [vmem:[%s5 + $0x6c] sm:$0xf]
    %v191 = vld [vmem:[%s5 + $0x70] sm:$0xf]
    %v192 = vld [vmem:[%s5 + $0x74] sm:$0xf]
    %v193 = vld [vmem:[%s5 + $0x78] sm:$0xf]
    %v194 = vld [vmem:[%s5 + $0x7c] sm:$0xf]
    %v195 = vld [vmem:[%s6] sm:$0x1]
    %v197 = vperm.slane %v195, 0
    %v231 = vunpack.c.l.b16 %v163
    %v232 = vunpack.c.l.b16 %v164
    %v233 = vunpack.c.l.b16 %v165
    %v234 = vunpack.c.l.b16 %v166
    %v235 = vunpack.c.l.b16 %v167
    %v236 = vunpack.c.l.b16 %v168
    %v237 = vunpack.c.l.b16 %v169
    %v238 = vunpack.c.l.b16 %v170
    %v239 = vunpack.c.l.b16 %v171
    %v240 = vunpack.c.l.b16 %v172
    %v241 = vunpack.c.l.b16 %v173
    %v242 = vunpack.c.l.b16 %v174
    %v243 = vunpack.c.l.b16 %v175
    %v244 = vunpack.c.l.b16 %v176
    %v245 = vunpack.c.l.b16 %v177
    %v246 = vunpack.c.l.b16 %v178
    %v247 = vunpack.c.l.b16 %v179
    %v248 = vunpack.c.l.b16 %v180
    %v249 = vunpack.c.l.b16 %v181
    %v250 = vunpack.c.l.b16 %v182
    %v251 = vunpack.c.l.b16 %v183
    %v252 = vunpack.c.l.b16 %v184
    %v253 = vunpack.c.l.b16 %v185
    %v254 = vunpack.c.l.b16 %v186
    %v255 = vunpack.c.l.b16 %v187
    %v256 = vunpack.c.l.b16 %v188
    %v257 = vunpack.c.l.b16 %v189
    %v258 = vunpack.c.l.b16 %v190
    %v259 = vunpack.c.l.b16 %v191
    %v260 = vunpack.c.l.b16 %v192
    %v261 = vunpack.c.l.b16 %v193
    %v262 = vunpack.c.l.b16 %v194
    %v263 = vpack.c.b16 %v232, %v231
    %v264 = vpack.c.b16 %v234, %v233
    %v265 = vpack.c.b16 %v236, %v235
    %v266 = vpack.c.b16 %v238, %v237
    %v267 = vpack.c.b16 %v240, %v239
    %v268 = vpack.c.b16 %v242, %v241
    %v269 = vpack.c.b16 %v244, %v243
    %v270 = vpack.c.b16 %v246, %v245
    %v271 = vpack.c.b16 %v248, %v247
    %v272 = vpack.c.b16 %v250, %v249
    %v273 = vpack.c.b16 %v252, %v251
    %v274 = vpack.c.b16 %v254, %v253
    %v275 = vpack.c.b16 %v256, %v255
    %v276 = vpack.c.b16 %v258, %v257
    %v277 = vpack.c.b16 %v260, %v259
    %v278 = vpack.c.b16 %v262, %v261
    %295 = vmatpush.bf16.msra.mxu0 %v270
    %296 = vmatpush.bf16.msra.mxu0 %v269
    %297 = vmatpush.bf16.msra.mxu0 %v268
    %298 = vmatpush.bf16.msra.mxu0 %v267
    %299 = vmatpush.bf16.msra.mxu0 %v266
    %300 = vmatpush.bf16.msra.mxu0 %v265
    %301 = vmatpush.bf16.msra.mxu0 %v264
    %302 = vmatpush.bf16.msra.mxu0 %v263
    %303 = vmatmul.bf16.gmra.mxu0 %v161
    %v304 = vpop.f32.mrf.mxu0
    %v305 = vadd.f32 %v197, %v304
    %v306 = vpop.f32.mrf.mxu0
    %307 = vdwg.mxu0
    %308 = vmatpush.bf16.msra.mxu0 %v278
    %309 = vmatpush.bf16.msra.mxu0 %v277
    %310 = vmatpush.bf16.msra.mxu0 %v276
    %311 = vmatpush.bf16.msra.mxu0 %v275
    %312 = vmatpush.bf16.msra.mxu0 %v274
    %313 = vmatpush.bf16.msra.mxu0 %v273
    %314 = vmatpush.bf16.msra.mxu0 %v272
    %315 = vmatpush.bf16.msra.mxu0 %v271
    %316 = vmatmul.bf16.gmra.mxu0 %v162
    %v317 = vpop.f32.mrf.mxu0
    %v318 = vadd.f32 %v305, %v317
    %v319 = vpop.f32.mrf.mxu0
    %320 = vdwg.mxu0
    %vm321 = vcmask 261120
    %322 = vst.msk [vmem:[#allocation2] sm:$0xff] %vm321, %v318
    // Predicated region
    $region30: #{tpu_custom_call.1} parent=1 // pred_check
      _
    $region31: #{tpu_custom_call.1} parent=1 // pred_check_branch
      %324 = sbr.rel (0) target = $region33
    $region32: #{tpu_custom_call.1} parent=1 // pred_region
      %326 = vsyncadd [#allocation3], 0
      %s328 = sshll.u32 [#allocation2], 4
      %s329 = int_to_ptr.vmem [resolvable:$true] %s328
      %s330 = sshll.u32 %s7, 4
      %s331 = int_to_ptr.hbm [resolvable:$true] %s330
      %333 = dma.vmem_to_hbm [thread:$0]  %s329, 128, %s331, [#allocation3]
    $region33: #{tpu_custom_call.1} parent=1 // pred_fallthru
      _
    // Predicated region
    $region34: #{tpu_custom_call.1} parent=1 // pred_check
      _
    $region35: #{tpu_custom_call.1} parent=1 // pred_check_branch
      %335 = sbr.rel (0) target = $region37
    $region36: #{tpu_custom_call.1} parent=1 // pred_region
      %337 = dma.done [#allocation3], 128
    $region37: #{tpu_custom_call.1} parent=1 // pred_fallthru
      _
    %338 = vsyncpa [#allocation3], 1

</llo_original>
